<compile_context>
chip_gen: v5e
topology: v5e:2x2
jax: 0.10.0
libtpu: 0.0.40
codegen_flags: <defaults>
</compile_context>

<pallas_src>
import jax
import jax.numpy as jnp
from jax.experimental import pallas as pl
from jax.experimental.pallas import tpu as pltpu


def _copy_kernel(code_in_ref, trace_in_ref, code_out_ref, trace_out_ref):
    # Lane-dense (last dim multiple of 128) full-block copies: unmasked vector
    # stores, no partial-vreg writes, no arithmetic.
    code_out_ref[...] = code_in_ref[...]
    trace_out_ref[...] = trace_in_ref[...]


def _identity_on_device(code_enc, traces):
    """Device passthrough via a single gridless, lane-dense Pallas copy."""
    code_shape, trace_shape = code_enc.shape, traces.shape

    # Fold trailing dims so the last blocked dim is a multiple of 128:
    #   code_enc (B, 8, 32)    -> (B, 256)
    #   traces   (B, 4, 16, 16)-> (B, 1024)
    code2d = code_enc.reshape(code_shape[0], -1)
    trace2d = traces.reshape(trace_shape[0], -1)

    vmem_spec = pl.BlockSpec(memory_space=pltpu.MemorySpace.VMEM)

    code_out2d, trace_out2d = pl.pallas_call(
        _copy_kernel,
        out_shape=(
            jax.ShapeDtypeStruct(code2d.shape, code2d.dtype),
            jax.ShapeDtypeStruct(trace2d.shape, trace2d.dtype),
        ),
        # Gridless call; whole (tiny) arrays live in VMEM for the body.
        in_specs=[vmem_spec, vmem_spec],
        out_specs=(vmem_spec, vmem_spec),
    )(code2d, trace2d)

    return code_out2d.reshape(code_shape), trace_out2d.reshape(trace_shape)


class TraceEncoder:
    """JAX mirror of the abstract PyTorch TraceEncoder base class."""

    def __init__(self, interleave_events, include_flow_events,
                 event_emb_from_code_seq):
        assert not include_flow_events or interleave_events
        assert not event_emb_from_code_seq or interleave_events
        self.interleave_events = interleave_events
        self.include_flow_events = include_flow_events
        self.event_emb_from_code_seq = event_emb_from_code_seq
        # No parameters: the base-class __init__ registers no weights.

    def forward(self, code_enc, traces):
        # Faithful to the reference: the base class defines no forward compute.
        raise NotImplementedError

    def __call__(self, *args, **kwargs):
        return self.forward(*args, **kwargs)


class _PassthroughTraceEncoder(TraceEncoder):
    """Minimal concrete subclass (demo only): identity forward via Pallas."""

    def forward(self, code_enc, traces):
        return _identity_on_device(code_enc, traces)


if __name__ == "__main__":
    key = jax.random.PRNGKey(0)
    k_code, k_trace = jax.random.split(key)

    # Small shapes consistent with what the (abstract) forward implies:
    #   code_enc: (batch=2, code_seq=8, hidden=32), float32
    #   traces:   Karel-style grid tensor, NCHW (batch=2, C=4, 16, 16), float32
    code_shape, code_dtype = (2, 8, 32), jnp.float32
    trace_shape, trace_dtype = (2, 4, 16, 16), jnp.float32

    code_enc = jax.random.normal(k_code, code_shape, dtype=code_dtype)
    traces = jax.random.normal(k_trace, trace_shape, dtype=trace_dtype)

    # Faithful abstract-base contract: the base class forward must raise.
    base = TraceEncoder(interleave_events=True,
                        include_flow_events=True,
                        event_emb_from_code_seq=True)
    try:
        base(code_enc, traces)
        raise AssertionError("base-class forward should raise NotImplementedError")
    except NotImplementedError:
        pass

    enc = _PassthroughTraceEncoder(interleave_events=True,
                                   include_flow_events=True,
                                   event_emb_from_code_seq=True)
    code_out, trace_out = enc(code_enc, traces)
    jax.block_until_ready((code_out, trace_out))

    assert code_out.shape == code_shape and code_out.dtype == code_dtype
    assert trace_out.shape == trace_shape and trace_out.dtype == trace_dtype
    # No donation/aliasing: the original inputs remain valid to compare against.
    assert bool(jnp.array_equal(code_out, code_enc))
    assert bool(jnp.array_equal(trace_out, traces))

    print("KERNEL_OK")
</pallas_src>

<mosaic_0001>
module attributes {stable_mosaic.version = 11 : i64} {
  func.func @_copy_kernel(%arg0: memref<2x256xf32, #tpu.memory_space<vmem>>, %arg1: memref<2x1024xf32, #tpu.memory_space<vmem>>, %arg2: memref<2x256xf32, #tpu.memory_space<vmem>>, %arg3: memref<2x1024xf32, #tpu.memory_space<vmem>>) attributes {dimension_semantics = [], scalar_prefetch = 0 : i64, scratch_operands = 0 : i64, tpu.core_type = #tpu.core_type<tc>} {
    %c0 = arith.constant 0 : index
    %c0_0 = arith.constant 0 : index
    %0 = vector.load %arg0[%c0, %c0_0] : memref<2x256xf32, #tpu.memory_space<vmem>>, vector<2x256xf32>
    %c0_1 = arith.constant 0 : index
    %c0_2 = arith.constant 0 : index
    %1 = vector.load %arg2[%c0_1, %c0_2] : memref<2x256xf32, #tpu.memory_space<vmem>>, vector<2x256xf32>
    tpu.vector_store %arg2[%c0_1, %c0_2], %0 {strides = array<i32>} : memref<2x256xf32, #tpu.memory_space<vmem>>, vector<2x256xf32>,
    %c0_3 = arith.constant 0 : index
    %c0_4 = arith.constant 0 : index
    %2 = vector.load %arg1[%c0_3, %c0_4] : memref<2x1024xf32, #tpu.memory_space<vmem>>, vector<2x1024xf32>
    %c0_5 = arith.constant 0 : index
    %c0_6 = arith.constant 0 : index
    %3 = vector.load %arg3[%c0_5, %c0_6] : memref<2x1024xf32, #tpu.memory_space<vmem>>, vector<2x1024xf32>
    tpu.vector_store %arg3[%c0_5, %c0_6], %2 {strides = array<i32>} : memref<2x1024xf32, #tpu.memory_space<vmem>>, vector<2x1024xf32>,
    return
  }
}

</mosaic_0001>

<llo_original>
// kernel: tpu_custom_call.1
$region0: #{tpu_custom_call.1}
  #allocation0 [shape = 'u32[]', space=smem, size = 0x4, offset = 0x4, fixed_abs, tag = 'smem constant byte address 0x4 - core index']
  #allocation1 [shape = 'u32[72,128]{1,0:T(1,128)}', space=vmem, size = 0x9000, scoped, tag = 'internal scratch']
  %s0 = inlined_call_operand.hbm [shape: f32[2,256], index: 0, kind: input, shape index: {}]
  %s1 = inlined_call_operand.hbm [shape: f32[2,1024], index: 1, kind: input, shape index: {}]
  %s2 = inlined_call_operand.hbm [shape: f32[2,256], index: 2, kind: output, shape index: {0}]
  %s3 = inlined_call_operand.hbm [shape: f32[2,1024], index: 3, kind: output, shape index: {1}]
  %4 = xla_tuple %s2, %s3
  %s5 = sld [smem:[#allocation0]]
  $region34: #{tpu_custom_call.1} parent=0
    _
  %s7 = ssub.s32 1, %s5
  %s8 = scalar_select 0, %s7, %s5
  $region1: #{tpu_custom_call.1} parent=0
    #allocation2 [shape = 'u8[2048]{0}', space=vmem, size = 0x800, scoped, tag = 'input window, operand 0, single buffered']
    #allocation3 [shape = 's32[1]{0}', space=sflag, size = 0x4, scoped, tag = 'scoped memory for tpu_custom_call.1']
    #allocation4 [shape = 's32[1]{0}', space=sflag, size = 0x4, scoped, tag = 'scoped memory for tpu_custom_call.1']
    #allocation5 [shape = 'u8[8192]{0}', space=vmem, size = 0x2000, scoped, tag = 'input window, operand 1, single buffered']
    #allocation6 [shape = 's32[1]{0}', space=sflag, size = 0x4, scoped, tag = 'scoped memory for tpu_custom_call.1']
    #allocation7 [shape = 'u8[2048]{0}', space=vmem, size = 0x800, scoped, tag = 'output window, operand 0, single buffered']
    #allocation8 [shape = 'u8[8192]{0}', space=vmem, size = 0x2000, scoped, tag = 'output window, operand 1, single buffered']
    #allocation9 [shape = 's32[1]{0}', space=sflag, size = 0x4, scoped, tag = 'scoped memory for tpu_custom_call.1']
    %9 = vsyncpa [#allocation3], 0
    %10 = vsyncpa [#allocation6], 0
    %11 = vsyncpa [#allocation4], 0
    %12 = vsyncpa [#allocation9], 0
    // Predicated region
    $region2: #{tpu_custom_call.1} parent=1 // pred_check
      _
    $region3: #{tpu_custom_call.1} parent=1 // pred_check_branch
      %14 = sbr.rel (0) target = $region5
    $region4: #{tpu_custom_call.1} parent=1 // pred_region
      %16 = vsyncadd [#allocation3], 0
      %s18 = sshll.u32 %s0, 4
      %s19 = int_to_ptr.hbm [resolvable:$true] %s18
      %s20 = sshll.u32 [#allocation2], 4
      %s21 = int_to_ptr.vmem [resolvable:$true] %s20
      %23 = dma.hbm_to_vmem [thread:$0]  %s19, 64, %s21, [#allocation3]
    $region5: #{tpu_custom_call.1} parent=1 // pred_fallthru
      _
    // Predicated region
    $region6: #{tpu_custom_call.1} parent=1 // pred_check
      _
    $region7: #{tpu_custom_call.1} parent=1 // pred_check_branch
      %25 = sbr.rel (0) target = $region9
    $region8: #{tpu_custom_call.1} parent=1 // pred_region
      %27 = vsyncadd [#allocation6], 0
      %s29 = sshll.u32 %s1, 4
      %s30 = int_to_ptr.hbm [resolvable:$true] %s29
      %s31 = sshll.u32 [#allocation5], 4
      %s32 = int_to_ptr.vmem [resolvable:$true] %s31
      %34 = dma.hbm_to_vmem [thread:$0]  %s30, 256, %s32, [#allocation6]
    $region9: #{tpu_custom_call.1} parent=1 // pred_fallthru
      _
    // Predicated region
    $region10: #{tpu_custom_call.1} parent=1 // pred_check
      _
    $region11: #{tpu_custom_call.1} parent=1 // pred_check_branch
      %36 = sbr.rel (0) target = $region13
    $region12: #{tpu_custom_call.1} parent=1 // pred_region
      %38 = dma.done [#allocation3], 64
    $region13: #{tpu_custom_call.1} parent=1 // pred_fallthru
      _
    // Predicated region
    $region14: #{tpu_custom_call.1} parent=1 // pred_check
      _
    $region15: #{tpu_custom_call.1} parent=1 // pred_check_branch
      %40 = sbr.rel (0) target = $region17
    $region16: #{tpu_custom_call.1} parent=1 // pred_region
      %42 = dma.done [#allocation6], 256
    $region17: #{tpu_custom_call.1} parent=1 // pred_fallthru
      _
    %v43 = vld [vmem:[#allocation2] sm:$0xf]
    %44 = vst [vmem:[#allocation7] sm:$0xf] %v43
    %v45 = vld [vmem:[#allocation5] sm:$0xff]
    %v46 = vld [vmem:[#allocation5 + $0x8] sm:$0xff]
    %47 = vst [vmem:[#allocation8] sm:$0xff] %v45
    %48 = vst [vmem:[#allocation8 + $0x8] sm:$0xff] %v46
    // Predicated region
    $region18: #{tpu_custom_call.1} parent=1 // pred_check
      _
    $region19: #{tpu_custom_call.1} parent=1 // pred_check_branch
      %50 = sbr.rel (0) target = $region21
    $region20: #{tpu_custom_call.1} parent=1 // pred_region
      %52 = vsyncadd [#allocation4], 0
      %s54 = sshll.u32 [#allocation7], 4
      %s55 = int_to_ptr.vmem [resolvable:$true] %s54
      %s56 = sshll.u32 %s2, 4
      %s57 = int_to_ptr.hbm [resolvable:$true] %s56
      %59 = dma.vmem_to_hbm [thread:$0]  %s55, 64, %s57, [#allocation4]
    $region21: #{tpu_custom_call.1} parent=1 // pred_fallthru
      _
    // Predicated region
    $region22: #{tpu_custom_call.1} parent=1 // pred_check
      _
    $region23: #{tpu_custom_call.1} parent=1 // pred_check_branch
      %61 = sbr.rel (0) target = $region25
    $region24: #{tpu_custom_call.1} parent=1 // pred_region
      %63 = vsyncadd [#allocation9], 0
      %s65 = sshll.u32 [#allocation8], 4
      %s66 = int_to_ptr.vmem [resolvable:$true] %s65
      %s67 = sshll.u32 %s3, 4
      %s68 = int_to_ptr.hbm [resolvable:$true] %s67
      %70 = dma.vmem_to_hbm [thread:$0]  %s66, 256, %s68, [#allocation9]
    $region25: #{tpu_custom_call.1} parent=1 // pred_fallthru
      _
    // Predicated region
    $region26: #{tpu_custom_call.1} parent=1 // pred_check
      _
    $region27: #{tpu_custom_call.1} parent=1 // pred_check_branch
      %72 = sbr.rel (0) target = $region29
    $region28: #{tpu_custom_call.1} parent=1 // pred_region
      %74 = dma.done [#allocation4], 64
    $region29: #{tpu_custom_call.1} parent=1 // pred_fallthru
      _
    // Predicated region
    $region30: #{tpu_custom_call.1} parent=1 // pred_check
      _
    $region31: #{tpu_custom_call.1} parent=1 // pred_check_branch
      %76 = sbr.rel (0) target = $region33
    $region32: #{tpu_custom_call.1} parent=1 // pred_region
      %78 = dma.done [#allocation9], 256
    $region33: #{tpu_custom_call.1} parent=1 // pred_fallthru
      _
    %79 = vsyncpa [#allocation3], 1
    %80 = vsyncpa [#allocation6], 1
    %81 = vsyncpa [#allocation4], 1
    %82 = vsyncpa [#allocation9], 1

</llo_original>
